<compile_context>
chip_gen: v7x
topology: tpu7x:2x2x1
jax: 0.10.0
libtpu: 0.0.40
codegen_flags: <defaults>
</compile_context>

<pallas_src>
import functools

import jax
import jax.numpy as jnp
from jax.experimental import pallas as pl
from jax.experimental.pallas import tpu as pltpu


def _round_up(a, b):
    return (a + b - 1) // b * b


def basic_block_kernel(x_ref, w_ref, bias_ref, o_ref, *, pool):
    """One grid step == one tile of output rows (rows = batch * length_out).

    x_ref:    (P, R_tile, KC_pad)  im2col rows; P==2 -> [even pos, odd pos]
    w_ref:    (KC_pad, C_pad)      conv weight, tap-major, BN scale pre-folded
    bias_ref: (1, C_pad)           folded BN shift (conv bias included)
    o_ref:    (R_tile, C_pad)      output rows (lane-dense, C_pad % 128 == 0)
    """
    w = w_ref[...]
    b = bias_ref[...]

    # Conv1d (+ BN scale, already folded into w) as a single MXU matmul.
    z = jnp.dot(x_ref[0], w, preferred_element_type=jnp.float32)
    z = jnp.maximum(z + b, 0.0)                       # BN shift + ReLU (VPU)

    if pool:
        # Second slab holds the odd positions of each pooling pair.
        z1 = jnp.dot(x_ref[1], w, preferred_element_type=jnp.float32)
        z1 = jnp.maximum(z1 + b, 0.0)
        z = jnp.maximum(z, z1)                        # MaxPool k=2 s=2 (pure VPU)

    # Dropout: identity in eval mode.
    o_ref[...] = z.astype(o_ref.dtype)


def basic_block_forward(x_ncl, conv_w, conv_b, bn_gamma, bn_beta,
                        bn_mean, bn_var, *, dilation=1, use_maxpool=True,
                        eps=1e-5, row_tile=512):
    """x_ncl: (N, Cin, L) float32, same convention as the PyTorch module."""
    N, Cin, L = x_ncl.shape
    Cout, _, K = conv_w.shape

    # SAME padding for a stride-1 dilated conv (matches torch padding='same').
    total_pad = dilation * (K - 1)
    pad_left = total_pad // 2
    pad_right = total_pad - pad_left

    # NCL -> NLC so channels sit on the lane axis, then pad the length.
    x_nlc = jnp.transpose(x_ncl, (0, 2, 1)).astype(jnp.float32)   # (N, L, Cin)
    x_pad = jnp.pad(x_nlc, ((0, 0), (pad_left, pad_right), (0, 0)))

    # im2col in the wrapper: K shifted views stacked along the contraction axis
    # (tap-major, channel-minor) -> one matmul per tile in the kernel.
    taps = [x_pad[:, k * dilation:k * dilation + L, :] for k in range(K)]
    x_col = jnp.concatenate(taps, axis=-1)                        # (N, L, K*Cin)

    if use_maxpool:
        # SAME maxpool, k=2 s=2: out length = ceil(L/2); torch pads one zero on
        # the right when L is odd.  Post-ReLU values are >= 0, so duplicating the
        # last even position into the odd slab is exactly equivalent.
        L_out = (L + 1) // 2
        even = x_col[:, 0::2, :]                                  # (N, L_out, KC)
        odd = x_col[:, 1::2, :]                                   # (N, L//2, KC)
        if L % 2 == 1:
            odd = jnp.concatenate([odd, x_col[:, L - 1:L, :]], axis=1)
        x_stk = jnp.stack([even, odd], axis=0)                    # (2, N, L_out, KC)
        P = 2
    else:
        L_out = L
        x_stk = x_col[None]
        P = 1

    KC = K * Cin
    R_out = N * L_out                         # batch folded into the row axis
    x_rows = x_stk.reshape(P, R_out, KC)

    # TPU-friendly padding: lane-dense channels (mult of 128), sublane-aligned
    # rows and contraction depth (mult of 8).  Padded rows/cols are zeros and
    # are sliced off after the call.
    C_pad = _round_up(Cout, 128)
    KC_pad = _round_up(KC, 8)
    R_tile = min(row_tile, _round_up(R_out, 8))
    R_pad = _round_up(R_out, R_tile)

    x_rows = jnp.pad(x_rows, ((0, 0), (0, R_pad - R_out), (0, KC_pad - KC)))

    # Fold eval-mode BN + conv bias into a per-channel affine; fold the scale
    # straight into the weight matrix so the kernel does matmul + add + relu.
    scale = bn_gamma.astype(jnp.float32) / jnp.sqrt(bn_var.astype(jnp.float32) + eps)
    bias = bn_beta.astype(jnp.float32) + (conv_b.astype(jnp.float32)
                                          - bn_mean.astype(jnp.float32)) * scale

    # Conv weight (Cout, Cin, K) -> (K*Cin, Cout), tap-major to match im2col.
    w_mat = jnp.transpose(conv_w, (2, 1, 0)).reshape(KC, Cout).astype(jnp.float32)
    w_mat = w_mat * scale[None, :]
    w_mat = jnp.pad(w_mat, ((0, KC_pad - KC), (0, C_pad - Cout)))
    bias = jnp.pad(bias, (0, C_pad - Cout)).reshape(1, C_pad)

    kernel = functools.partial(basic_block_kernel, pool=use_maxpool)

    out_rows = pl.pallas_call(
        kernel,
        out_shape=jax.ShapeDtypeStruct((R_pad, C_pad), jnp.float32),
        grid_spec=pltpu.PrefetchScalarGridSpec(
            num_scalar_prefetch=0,
            grid=(R_pad // R_tile,),
            in_specs=[
                pl.BlockSpec((P, R_tile, KC_pad), lambda i: (0, i, 0)),
                pl.BlockSpec((KC_pad, C_pad), lambda i: (0, 0)),
                pl.BlockSpec((1, C_pad), lambda i: (0, 0)),
            ],
            out_specs=pl.BlockSpec((R_tile, C_pad), lambda i: (i, 0)),
        ),
        compiler_params=pltpu.CompilerParams(
            dimension_semantics=("parallel",),          # row tiles -> megacore
            vmem_limit_bytes=32 * 1024 * 1024),         # safe on v5e/v6e/v7x
    )(x_rows, w_mat, bias)

    # Strip channel/row padding, restore (N, Cout, L_out) PyTorch convention.
    out = out_rows[:R_out, :Cout].reshape(N, L_out, Cout)
    return jnp.transpose(out, (0, 2, 1))


def basic_block_reference(x_ncl, conv_w, conv_b, bn_gamma, bn_beta,
                          bn_mean, bn_var, *, dilation=1, use_maxpool=True,
                          eps=1e-5):
    """Pure-JAX reference (same eval-mode semantics) for a sanity check."""
    N, Cin, L = x_ncl.shape
    Cout, _, K = conv_w.shape
    total_pad = dilation * (K - 1)
    pad_left = total_pad // 2
    pad_right = total_pad - pad_left
    x_nlc = jnp.transpose(x_ncl, (0, 2, 1)).astype(jnp.float32)
    x_pad = jnp.pad(x_nlc, ((0, 0), (pad_left, pad_right), (0, 0)))
    acc = jnp.zeros((N, L, Cout), jnp.float32)
    for k in range(K):
        acc = acc + jnp.einsum("nlc,co->nlo",
                               x_pad[:, k * dilation:k * dilation + L, :],
                               conv_w[:, :, k].T)
    scale = bn_gamma / jnp.sqrt(bn_var + eps)
    bias = bn_beta + (conv_b - bn_mean) * scale
    z = jnp.maximum(acc + conv_b * 0.0, 0.0) * 0.0  # placeholder to keep dtype
    z = jnp.maximum(acc * scale + bias, 0.0)
    if use_maxpool:
        L_o = (L + 1) // 2
        if L % 2 == 1:
            z = jnp.pad(z, ((0, 0), (0, 1), (0, 0)))
        z = jnp.max(z.reshape(N, L_o, 2, Cout), axis=2)
    return jnp.transpose(z, (0, 2, 1))


if __name__ == "__main__":
    # Small shapes consistent with the module's forward.
    N, Cin, Cout, L = 2, 4, 8, 16
    K = 3

    key = jax.random.PRNGKey(0)
    k_x, k_w, k_b, k_g, k_be, k_m, k_v = jax.random.split(key, 7)

    x = jax.random.normal(k_x, (N, Cin, L), dtype=jnp.float32)

    # Deterministic parameter init (shapes from the module __init__).
    conv_w = jax.random.normal(k_w, (Cout, Cin, K), dtype=jnp.float32) * 0.2
    conv_b = jax.random.normal(k_b, (Cout,), dtype=jnp.float32) * 0.1
    bn_gamma = 1.0 + 0.1 * jax.random.normal(k_g, (Cout,), dtype=jnp.float32)
    bn_beta = 0.1 * jax.random.normal(k_be, (Cout,), dtype=jnp.float32)
    bn_mean = 0.1 * jax.random.normal(k_m, (Cout,), dtype=jnp.float32)
    bn_var = jnp.abs(jax.random.normal(k_v, (Cout,), dtype=jnp.float32)) + 0.5

    # Config 1: dilation=1, with maxpool (the default BasicBlock path).
    out = basic_block_forward(x, conv_w, conv_b, bn_gamma, bn_beta,
                              bn_mean, bn_var, dilation=1, use_maxpool=True)
    out = jax.block_until_ready(out)
    ref = basic_block_reference(x, conv_w, conv_b, bn_gamma, bn_beta,
                                bn_mean, bn_var, dilation=1, use_maxpool=True)
    assert out.shape == (N, Cout, L // 2), out.shape
    assert jnp.allclose(out, ref, atol=1e-5, rtol=1e-5), "mismatch (pool)"

    # Config 2: dilation=2, no maxpool (exercises the other branch).
    out2 = basic_block_forward(x, conv_w, conv_b, bn_gamma, bn_beta,
                               bn_mean, bn_var, dilation=2, use_maxpool=False)
    out2 = jax.block_until_ready(out2)
    ref2 = basic_block_reference(x, conv_w, conv_b, bn_gamma, bn_beta,
                                 bn_mean, bn_var, dilation=2, use_maxpool=False)
    assert out2.shape == (N, Cout, L), out2.shape
    assert jnp.allclose(out2, ref2, atol=1e-5, rtol=1e-5), "mismatch (no pool)"

    # Config 3: odd length with maxpool (SAME pooling pads on the right).
    L_odd = 15
    x3 = jax.random.normal(k_x, (N, Cin, L_odd), dtype=jnp.float32)
    out3 = basic_block_forward(x3, conv_w, conv_b, bn_gamma, bn_beta,
                               bn_mean, bn_var, dilation=1, use_maxpool=True)
    out3 = jax.block_until_ready(out3)
    ref3 = basic_block_reference(x3, conv_w, conv_b, bn_gamma, bn_beta,
                                 bn_mean, bn_var, dilation=1, use_maxpool=True)
    assert out3.shape == (N, Cout, (L_odd + 1) // 2), out3.shape
    assert jnp.allclose(out3, ref3, atol=1e-5, rtol=1e-5), "mismatch (odd L)"

    print("KERNEL_OK")
</pallas_src>

<mosaic_0001>
module attributes {stable_mosaic.version = 11 : i64} {
  func.func @basic_block_kernel(%arg0: i32, %arg1: memref<2x16x16xf32, #tpu.memory_space<vmem>>, %arg2: memref<16x128xf32, #tpu.memory_space<vmem>>, %arg3: memref<1x128xf32, #tpu.memory_space<vmem>>, %arg4: memref<16x128xf32, #tpu.memory_space<vmem>>) attributes {dimension_semantics = [#tpu.dimension_semantics<parallel>], iteration_bounds = array<i64: 1>, scalar_prefetch = 0 : i64, scratch_operands = 0 : i64, tpu.core_type = #tpu.core_type<tc>, window_params = [{transform_indices = @transform_0, window_bounds = array<i64: 2, 16, 16>}, {pipeline_mode = #tpu.pipeline_mode<synchronous>, transform_indices = @transform_1, window_bounds = array<i64: 16, 128>}, {pipeline_mode = #tpu.pipeline_mode<synchronous>, transform_indices = @transform_2, window_bounds = array<i64: 1, 128>}, {transform_indices = @transform_3, window_bounds = array<i64: 16, 128>}]} {
    %c0 = arith.constant 0 : index
    %c0_0 = arith.constant 0 : index
    %0 = vector.load %arg2[%c0, %c0_0] : memref<16x128xf32, #tpu.memory_space<vmem>>, vector<16x128xf32>
    %c0_1 = arith.constant 0 : index
    %c0_2 = arith.constant 0 : index
    %1 = vector.load %arg3[%c0_1, %c0_2] : memref<1x128xf32, #tpu.memory_space<vmem>>, vector<1x128xf32>
    %c0_3 = arith.constant 0 : index
    %c0_4 = arith.constant 0 : index
    %c0_5 = arith.constant 0 : index
    %2 = vector.load %arg1[%c0_3, %c0_4, %c0_5] : memref<2x16x16xf32, #tpu.memory_space<vmem>>, vector<1x16x16xf32>
    %3 = vector.shape_cast %2 : vector<1x16x16xf32> to vector<16x16xf32>
    %cst = arith.constant dense<0.000000e+00> : vector<16x128xf32>
    %4 = tpu.matmul %3, %0, %cst {dimension_numbers = #tpu.dot_dimension_numbers<[1], [0], [0], [1], [0, 0, 1, 1], [], []>} : vector<16x16xf32>, vector<16x128xf32>, vector<16x128xf32> -> vector<16x128xf32>
    %5 = vector.broadcast %1 : vector<1x128xf32> to vector<16x128xf32>
    %6 = arith.addf %4, %5 : vector<16x128xf32>
    %cst_6 = arith.constant 0.000000e+00 : f32
    %7 = vector.broadcast %cst_6 : f32 to vector<16x128xf32>
    %8 = arith.maximumf %6, %7 : vector<16x128xf32>
    %c1 = arith.constant 1 : index
    %c0_7 = arith.constant 0 : index
    %c0_8 = arith.constant 0 : index
    %9 = vector.load %arg1[%c1, %c0_7, %c0_8] : memref<2x16x16xf32, #tpu.memory_space<vmem>>, vector<1x16x16xf32>
    %10 = vector.shape_cast %9 : vector<1x16x16xf32> to vector<16x16xf32>
    %cst_9 = arith.constant dense<0.000000e+00> : vector<16x128xf32>
    %11 = tpu.matmul %10, %0, %cst_9 {dimension_numbers = #tpu.dot_dimension_numbers<[1], [0], [0], [1], [0, 0, 1, 1], [], []>} : vector<16x16xf32>, vector<16x128xf32>, vector<16x128xf32> -> vector<16x128xf32>
    %12 = vector.broadcast %1 : vector<1x128xf32> to vector<16x128xf32>
    %13 = arith.addf %11, %12 : vector<16x128xf32>
    %cst_10 = arith.constant 0.000000e+00 : f32
    %14 = vector.broadcast %cst_10 : f32 to vector<16x128xf32>
    %15 = arith.maximumf %13, %14 : vector<16x128xf32>
    %16 = arith.maximumf %8, %15 : vector<16x128xf32>
    %c0_11 = arith.constant 0 : index
    %c0_12 = arith.constant 0 : index
    %17 = vector.load %arg4[%c0_11, %c0_12] : memref<16x128xf32, #tpu.memory_space<vmem>>, vector<16x128xf32>
    tpu.vector_store %arg4[%c0_11, %c0_12], %16 {strides = array<i32>} : memref<16x128xf32, #tpu.memory_space<vmem>>, vector<16x128xf32>,
    return
  }
  func.func @transform_0(%arg0: i32) -> (i32, i32, i32) {
    %c0_i32 = arith.constant 0 : i32
    %c0_i32_0 = arith.constant 0 : i32
    %c0_i32_1 = arith.constant 0 : i32
    return %c0_i32, %arg0, %c0_i32_0 : i32, i32, i32
  }
  func.func @transform_1(%arg0: i32) -> (i32, i32) {
    %c0_i32 = arith.constant 0 : i32
    %c0_i32_0 = arith.constant 0 : i32
    %c0_i32_1 = arith.constant 0 : i32
    return %c0_i32, %c0_i32_0 : i32, i32
  }
  func.func @transform_2(%arg0: i32) -> (i32, i32) {
    %c0_i32 = arith.constant 0 : i32
    %c0_i32_0 = arith.constant 0 : i32
    %c0_i32_1 = arith.constant 0 : i32
    return %c0_i32, %c0_i32_0 : i32, i32
  }
  func.func @transform_3(%arg0: i32) -> (i32, i32) {
    %c0_i32 = arith.constant 0 : i32
    %c0_i32_0 = arith.constant 0 : i32
    return %arg0, %c0_i32 : i32, i32
  }
}

</mosaic_0001>

<llo_original>
// kernel: tpu_custom_call.1
$region0: #{tpu_custom_call.1}
  #allocation0 [shape = 'u32[]', space=smem, size = 0x4, offset = 0x4, fixed_abs, tag = 'smem constant byte address 0x4 - core index']
  #allocation1 [shape = 'u32[144,128]{1,0:T(1,128)}', space=vmem, size = 0x12000, scoped, tag = 'internal scratch']
  %s0 = inlined_call_operand.hbm [shape: f32[2,16,16], index: 0, kind: input, shape index: {}]
  %s1 = inlined_call_operand.hbm [shape: f32[16,128], index: 1, kind: input, shape index: {}]
  %s2 = inlined_call_operand.vmem [shape: f32[1,128], index: 2, kind: input, shape index: {}]
  %s3 = inlined_call_operand.hbm [shape: f32[16,128], index: 3, kind: output, shape index: {}]
  %s4 = sld [smem:[#allocation0]]
  $region30: #{tpu_custom_call.1} parent=0
    _
  %s6 = ssub.s32 1, %s4
  %s7 = scalar_select 0, %s6, %s4
  $region1: #{tpu_custom_call.1} parent=0
    #allocation2 [shape = 'u8[16384]{0}', space=vmem, size = 0x4000, scoped, tag = 'input window, operand 0, single buffered']
    #allocation3 [shape = 's32[1]{0}', space=sflag, size = 0x4, scoped, tag = 'scoped memory for tpu_custom_call.1']
    #allocation4 [shape = 's32[1]{0}', space=sflag, size = 0x4, scoped, tag = 'scoped memory for tpu_custom_call.1']
    #allocation5 [shape = 'u8[8192]{0}', space=vmem, size = 0x2000, scoped, tag = 'input window, operand 1, single buffered']
    #allocation6 [shape = 's32[1]{0}', space=sflag, size = 0x4, scoped, tag = 'scoped memory for tpu_custom_call.1']
    #allocation7 [shape = 'u8[8192]{0}', space=vmem, size = 0x2000, scoped, tag = 'output window, operand 0, single buffered']
    %8 = vsyncpa [#allocation3], 0
    %9 = vsyncpa [#allocation6], 0
    %10 = vsyncpa [#allocation4], 0
    // Predicated region
    $region2: #{tpu_custom_call.1} parent=1 // pred_check
      _
    $region3: #{tpu_custom_call.1} parent=1 // pred_check_branch
      %12 = sbr.rel (0) target = $region5
    $region4: #{tpu_custom_call.1} parent=1 // pred_region
      %s14 = ssub.s32 512, 512
      %15 = vsyncadd [#allocation3], %s14
      %s16 = sshll.u32 [#allocation2], 4
      %s17 = int_to_ptr.vmem [resolvable:$true] %s16
      %22 = dma.hbm_to_vmem [thread:$0]  %s0, 512, %s17, [#allocation3], 128, 128, 8
    $region5: #{tpu_custom_call.1} parent=1 // pred_fallthru
      _
    // Predicated region
    $region6: #{tpu_custom_call.1} parent=1 // pred_check
      _
    $region7: #{tpu_custom_call.1} parent=1 // pred_check_branch
      %24 = sbr.rel (0) target = $region9
    $region8: #{tpu_custom_call.1} parent=1 // pred_region
      %s26 = ssub.s32 256, 256
      %27 = vsyncadd [#allocation6], %s26
      %s28 = sshll.u32 [#allocation5], 4
      %s29 = int_to_ptr.vmem [resolvable:$true] %s28
      %34 = dma.hbm_to_vmem [thread:$0]  %s1, 256, %s29, [#allocation6], 128, 128, 8
    $region9: #{tpu_custom_call.1} parent=1 // pred_fallthru
      _
    // Predicated region
    $region10: #{tpu_custom_call.1} parent=1 // pred_check
      _
    $region11: #{tpu_custom_call.1} parent=1 // pred_check_branch
      %36 = sbr.rel (0) target = $region13
    $region12: #{tpu_custom_call.1} parent=1 // pred_region
      _
    $region13: #{tpu_custom_call.1} parent=1 // pred_fallthru
      _
    // Predicated region
    $region14: #{tpu_custom_call.1} parent=1 // pred_check
      _
    $region15: #{tpu_custom_call.1} parent=1 // pred_check_branch
      %38 = sbr.rel (0) target = $region17
    $region16: #{tpu_custom_call.1} parent=1 // pred_region
      %39 = dma.done [#allocation3], 512
    $region17: #{tpu_custom_call.1} parent=1 // pred_fallthru
      _
    // Predicated region
    $region18: #{tpu_custom_call.1} parent=1 // pred_check
      _
    $region19: #{tpu_custom_call.1} parent=1 // pred_check_branch
      %41 = sbr.rel (0) target = $region21
    $region20: #{tpu_custom_call.1} parent=1 // pred_region
      %42 = dma.done [#allocation6], 256
    $region21: #{tpu_custom_call.1} parent=1 // pred_fallthru
      _
    %v43 = vld [vmem:[#allocation5] sm:$0xff]
    %v44 = vld [vmem:[#allocation5 + $0x8] sm:$0xff]
    %v45 = vld [vmem:[%s2] sm:$0x1]
    %v46 = vld [vmem:[#allocation2] sm:$0xff]
    %v47 = vld [vmem:[#allocation2 + $0x8] sm:$0xff]
    %v49 = vlaneseq
    %v50 = vshrl.u32 %v49, 7
    %v51 = vsub.s32 0, %v50
    %v52 = vrot.slane %v45, %v51
    %vm54 = vcmask 130048
    %v56 = vsel %vm54, %v46, 0
    %v59 = vsel %vm54, %v47, 0
    %61 = vmatprep.subr.mxu0 0.0
    %62 = vmatpush1.msra.mxu0 %v43
    %63 = vmatprep.subr.mxu0 0.0
    %64 = vmatpush1.msra.mxu0 %v44
    %65 = vmatprep.subr.mxu0 0.0
    %66 = vmatpush1.msra.mxu0 0.0
    %67 = vmatprep.subr.mxu0 0.0
    %68 = vmatpush1.msra.mxu0 0.0
    %69 = vmatprep.subr.mxu0 0.0
    %70 = vmatpush1.msra.mxu0 0.0
    %71 = vmatprep.subr.mxu0 0.0
    %72 = vmatpush1.msra.mxu0 0.0
    %73 = vmatprep.subr.mxu0 0.0
    %74 = vmatpush1.msra.mxu0 0.0
    %75 = vmatprep.subr.mxu0 0.0
    %76 = vmatpush1.msra.mxu0 0.0
    %77 = vmatprep.subr.mxu0 0.0
    %78 = vmatpush1.msra.mxu0 0.0
    %79 = vmatprep.subr.mxu0 0.0
    %80 = vmatpush1.msra.mxu0 0.0
    %81 = vmatprep.subr.mxu0 0.0
    %82 = vmatpush1.msra.mxu0 0.0
    %83 = vmatprep.subr.mxu0 0.0
    %84 = vmatpush1.msra.mxu0 0.0
    %85 = vmatprep.subr.mxu0 0.0
    %86 = vmatpush1.msra.mxu0 0.0
    %87 = vmatprep.subr.mxu0 0.0
    %88 = vmatpush1.msra.mxu0 0.0
    %89 = vmatprep.subr.mxu0 0.0
    %90 = vmatpush1.msra.mxu0 0.0
    %91 = vmatprep.subr.mxu0 0.0
    %92 = vmatpush1.msra.mxu0 0.0
    %93 = vmatprep.subr.mxu0 0.0
    %94 = vmatpush1.msra.mxu0 0.0
    %95 = vmatprep.subr.mxu0 0.0
    %96 = vmatpush1.msra.mxu0 0.0
    %97 = vmatprep.subr.mxu0 0.0
    %98 = vmatpush1.msra.mxu0 0.0
    %99 = vmatprep.subr.mxu0 0.0
    %100 = vmatpush1.msra.mxu0 0.0
    %101 = vmatprep.subr.mxu0 0.0
    %102 = vmatpush1.msra.mxu0 0.0
    %103 = vmatprep.subr.mxu0 0.0
    %104 = vmatpush1.msra.mxu0 0.0
    %105 = vmatprep.subr.mxu0 0.0
    %106 = vmatpush1.msra.mxu0 0.0
    %107 = vmatprep.subr.mxu0 0.0
    %108 = vmatpush1.msra.mxu0 0.0
    %109 = vmatprep.subr.mxu0 0.0
    %110 = vmatpush1.msra.mxu0 0.0
    %111 = vmatprep.subr.mxu0 0.0
    %112 = vmatpush1.msra.mxu0 0.0
    %113 = vmatprep.subr.mxu0 0.0
    %114 = vmatpush1.msra.mxu0 0.0
    %115 = vmatprep.subr.mxu0 0.0
    %116 = vmatpush1.msra.mxu0 0.0
    %117 = vmatprep.subr.mxu0 0.0
    %118 = vmatpush1.msra.mxu0 0.0
    %119 = vmatprep.subr.mxu0 0.0
    %120 = vmatpush1.msra.mxu0 0.0
    %121 = vmatprep.subr.mxu0 0.0
    %122 = vmatpush1.msra.mxu0 0.0
    %123 = vmatprep.subr.mxu0 0.0
    %124 = vmatpush1.msra.mxu0 0.0
    %125 = vmatprep.mubr.f32.mxu0 0.0
    %126 = vmatmul.mubr.f32.gmra.mrb[0].mxu0 %v56
    %v127 = vpop.f32.mrb[0].mxu0
    %v128 = vadd.f32 %v52, %v127
    %v129 = vpop.f32.mrb[0].mxu0
    %130 = vmatprep.mubr.f32.mxu0 0.0
    %131 = vmatmul.mubr.f32.gmra.mrb[0].mxu0 %v59
    %v132 = vpop.f32.mrb[0].mxu0
    %v133 = vadd.f32 %v52, %v132
    %v134 = vpop.f32.mrb[0].mxu0
    %135 = vdwg.mxu0
    %v136 = vmax.f32 %v128, 0.0
    %v137 = vmax.f32 %v133, 0.0
    %s138 = scalar_lea.vmem [#allocation2], 16
    %v139 = vld [vmem:[%s138] sm:$0xff]
    %v140 = vld [vmem:[%s138 + $0x8] sm:$0xff]
    %v142 = vsel %vm54, %v139, 0
    %v145 = vsel %vm54, %v140, 0
    %147 = vmatprep.subr.mxu0 0.0
    %148 = vmatpush1.msra.mxu0 %v43
    %149 = vmatprep.subr.mxu0 0.0
    %150 = vmatpush1.msra.mxu0 %v44
    %151 = vmatprep.subr.mxu0 0.0
    %152 = vmatpush1.msra.mxu0 0.0
    %153 = vmatprep.subr.mxu0 0.0
    %154 = vmatpush1.msra.mxu0 0.0
    %155 = vmatprep.subr.mxu0 0.0
    %156 = vmatpush1.msra.mxu0 0.0
    %157 = vmatprep.subr.mxu0 0.0
    %158 = vmatpush1.msra.mxu0 0.0
    %159 = vmatprep.subr.mxu0 0.0
    %160 = vmatpush1.msra.mxu0 0.0
    %161 = vmatprep.subr.mxu0 0.0
    %162 = vmatpush1.msra.mxu0 0.0
    %163 = vmatprep.subr.mxu0 0.0
    %164 = vmatpush1.msra.mxu0 0.0
    %165 = vmatprep.subr.mxu0 0.0
    %166 = vmatpush1.msra.mxu0 0.0
    %167 = vmatprep.subr.mxu0 0.0
    %168 = vmatpush1.msra.mxu0 0.0
    %169 = vmatprep.subr.mxu0 0.0
    %170 = vmatpush1.msra.mxu0 0.0
    %171 = vmatprep.subr.mxu0 0.0
    %172 = vmatpush1.msra.mxu0 0.0
    %173 = vmatprep.subr.mxu0 0.0
    %174 = vmatpush1.msra.mxu0 0.0
    %175 = vmatprep.subr.mxu0 0.0
    %176 = vmatpush1.msra.mxu0 0.0
    %177 = vmatprep.subr.mxu0 0.0
    %178 = vmatpush1.msra.mxu0 0.0
    %179 = vmatprep.subr.mxu0 0.0
    %180 = vmatpush1.msra.mxu0 0.0
    %181 = vmatprep.subr.mxu0 0.0
    %182 = vmatpush1.msra.mxu0 0.0
    %183 = vmatprep.subr.mxu0 0.0
    %184 = vmatpush1.msra.mxu0 0.0
    %185 = vmatprep.subr.mxu0 0.0
    %186 = vmatpush1.msra.mxu0 0.0
    %187 = vmatprep.subr.mxu0 0.0
    %188 = vmatpush1.msra.mxu0 0.0
    %189 = vmatprep.subr.mxu0 0.0
    %190 = vmatpush1.msra.mxu0 0.0
    %191 = vmatprep.subr.mxu0 0.0
    %192 = vmatpush1.msra.mxu0 0.0
    %193 = vmatprep.subr.mxu0 0.0
    %194 = vmatpush1.msra.mxu0 0.0
    %195 = vmatprep.subr.mxu0 0.0
    %196 = vmatpush1.msra.mxu0 0.0
    %197 = vmatprep.subr.mxu0 0.0
    %198 = vmatpush1.msra.mxu0 0.0
    %199 = vmatprep.subr.mxu0 0.0
    %200 = vmatpush1.msra.mxu0 0.0
    %201 = vmatprep.subr.mxu0 0.0
    %202 = vmatpush1.msra.mxu0 0.0
    %203 = vmatprep.subr.mxu0 0.0
    %204 = vmatpush1.msra.mxu0 0.0
    %205 = vmatprep.subr.mxu0 0.0
    %206 = vmatpush1.msra.mxu0 0.0
    %207 = vmatprep.subr.mxu0 0.0
    %208 = vmatpush1.msra.mxu0 0.0
    %209 = vmatprep.subr.mxu0 0.0
    %210 = vmatpush1.msra.mxu0 0.0
    %211 = vmatprep.mubr.f32.mxu0 0.0
    %212 = vmatmul.mubr.f32.gmra.mrb[0].mxu0 %v142
    %v213 = vpop.f32.mrb[0].mxu0
    %v214 = vadd.f32 %v52, %v213
    %v215 = vpop.f32.mrb[0].mxu0
    %216 = vmatprep.mubr.f32.mxu0 0.0
    %217 = vmatmul.mubr.f32.gmra.mrb[0].mxu0 %v145
    %v218 = vpop.f32.mrb[0].mxu0
    %v219 = vadd.f32 %v52, %v218
    %v220 = vpop.f32.mrb[0].mxu0
    %221 = vdwg.mxu0
    %v222 = vmax.f32 %v214, 0.0
    %v223 = vmax.f32 %v219, 0.0
    %v224 = vmax.f32 %v136, %v222
    %v225 = vmax.f32 %v137, %v223
    %226 = vst [vmem:[#allocation7] sm:$0xff] %v224
    %227 = vst [vmem:[#allocation7 + $0x8] sm:$0xff] %v225
    // Predicated region
    $region22: #{tpu_custom_call.1} parent=1 // pred_check
      _
    $region23: #{tpu_custom_call.1} parent=1 // pred_check_branch
      %229 = sbr.rel (0) target = $region25
    $region24: #{tpu_custom_call.1} parent=1 // pred_region
      %s231 = ssub.s32 256, 256
      %232 = vsyncadd [#allocation4], %s231
      %s233 = sshll.u32 [#allocation7], 4
      %s234 = int_to_ptr.vmem [resolvable:$true] %s233
      %239 = dma.vmem_to_hbm [thread:$0]  %s234, 256, %s3, [#allocation4], 128, 128, 8
    $region25: #{tpu_custom_call.1} parent=1 // pred_fallthru
      _
    // Predicated region
    $region26: #{tpu_custom_call.1} parent=1 // pred_check
      _
    $region27: #{tpu_custom_call.1} parent=1 // pred_check_branch
      %241 = sbr.rel (0) target = $region29
    $region28: #{tpu_custom_call.1} parent=1 // pred_region
      %242 = dma.done [#allocation4], 256
    $region29: #{tpu_custom_call.1} parent=1 // pred_fallthru
      _
    %243 = vsyncpa [#allocation3], 1
    %244 = vsyncpa [#allocation6], 1
    %245 = vsyncpa [#allocation4], 1

</llo_original>
